<compile_context>
chip_gen: v7x
topology: tpu7x:2x2x1
jax: 0.10.0
libtpu: 0.0.40
codegen_flags: <defaults>
</compile_context>

<pallas_src>
import jax
import jax.numpy as jnp
from jax import lax
from jax.experimental import pallas as pl
from jax.experimental.pallas import tpu as pltpu

CENTER = 0.0   # RBF_interp.center
DELTA = 1.0    # RBF_interp.delta


def rbf_interp_kernel(lin_ref, x_ref, ker_ref, c2_ref, w_ref, o_ref):
    # lin_ref: (1, 1)   SMEM scalar: whole-batch linear term + bias
    # x_ref  : (TB, D)  raw batch tile (padding rows are zeros; results discarded)
    # ker_ref: (Kp, D)  zero-padded RBF centers (grid-resident)
    # c2_ref : (Kp, 1)  precomputed ||c_k||^2   (grid-resident)
    # w_ref  : (1, Kp)  zero-padded weights     (grid-resident)
    # o_ref  : (1, TB)  lane-dense output tile
    xn = (x_ref[...] - CENTER) * (1.0 / DELTA)                       # VPU normalize (free under exp)

    # scores[k, b] = c_k . x_b : contract on D, batch stays on the lane axis (no transpose).
    xc = lax.dot_general(ker_ref[...], xn,
                         (((1,), (1,)), ((), ())),
                         preferred_element_type=jnp.float32)          # (Kp, TB) on the MXU

    # ||x_b||^2 as a lane-dense row: ones(1, D) contracted with (xn*xn) on D (MXU matvec).
    x2 = lax.dot_general(jnp.ones((1, xn.shape[1]), jnp.float32), xn * xn,
                         (((1,), (1,)), ((), ())),
                         preferred_element_type=jnp.float32)          # (1, TB)

    r2 = jnp.maximum(c2_ref[...] + x2 - 2.0 * xc, 0.0)                # (Kp, TB)
    # Keep exp in f32: bf16 exp (a v6e/v7x option) would break the 1e-4 tolerance.
    rbfs = jnp.exp(-r2)                                               # Gaussian, no sqrt round-trip
    rbf_sum = jnp.dot(w_ref[...], rbfs,
                      preferred_element_type=jnp.float32)             # (1, TB) MXU matvec
    o_ref[...] = rbf_sum + lin_ref[0, 0]


def rbf_interp(x, kernels, weights, linear_params, *, tb=512):
    B, D = x.shape
    K = kernels.shape[0]

    x = x.astype(jnp.float32)
    kernels = kernels.astype(jnp.float32)
    weights = weights.reshape(1, K).astype(jnp.float32)
    lp = linear_params.astype(jnp.float32)
    fpar = lp[:D]

    # Whole-batch linear scalar + bias (torch: lin.sum() + linear_params[D]).
    # Computed from the REAL batch only (padded rows must not contribute).
    col_sum = jnp.sum(x, axis=0)                                      # (D,)
    lin_scalar = ((jnp.dot(col_sum, fpar) - CENTER * B * jnp.sum(fpar)) / DELTA
                  + lp[D]).reshape(1, 1)

    # Pad K only to a sublane multiple of 8 (33 -> 40); zero weights => zero contribution.
    K_pad = pl.cdiv(K, 8) * 8
    ker_p = jnp.zeros((K_pad, D), jnp.float32).at[:K, :].set(kernels)
    w_p = jnp.zeros((1, K_pad), jnp.float32).at[:, :K].set(weights)
    c2 = jnp.sum(ker_p * ker_p, axis=-1, keepdims=True)               # (K_pad, 1), loop-invariant

    # Batch tiling: lane-dense output tiles of width tb (multiple of 128).
    b128 = pl.cdiv(B, 128) * 128
    tb = max(128, min((tb // 128) * 128, b128))
    # v7x megacore: keep >= 2 grid steps when the batch allows it (both TensorCores busy).
    if b128 >= 256 and pl.cdiv(b128, tb) < 2:
        tb = max(128, ((tb // 2) // 128) * 128)
    B_pad = pl.cdiv(B, tb) * tb
    x_pad = x if B_pad == B else jnp.pad(x, ((0, B_pad - B), (0, 0)))

    cost = pl.CostEstimate(
        flops=int(2 * B_pad * K_pad * D + 2 * B_pad * D
                  + 7 * B_pad * K_pad + 2 * B_pad * D),
        transcendentals=int(B_pad * K_pad),
        bytes_accessed=int(4 * (B_pad * D + B_pad + K_pad * D + 2 * K_pad)),
    )

    out = pl.pallas_call(
        rbf_interp_kernel,
        out_shape=jax.ShapeDtypeStruct((1, B_pad), jnp.float32),
        grid=(B_pad // tb,),
        in_specs=[
            pl.BlockSpec(memory_space=pltpu.MemorySpace.SMEM),        # lin_scalar (1,1)
            pl.BlockSpec((tb, D), lambda i: (i, 0)),                  # raw batch tile
            pl.BlockSpec((K_pad, D), lambda i: (0, 0)),               # centers (resident)
            pl.BlockSpec((K_pad, 1), lambda i: (0, 0)),               # c2 (resident)
            pl.BlockSpec((1, K_pad), lambda i: (0, 0)),               # weights (resident)
        ],
        out_specs=pl.BlockSpec((1, tb), lambda i: (0, i)),
        compiler_params=pltpu.CompilerParams(
            dimension_semantics=("parallel",)),
        cost_estimate=cost,
    )(lin_scalar, x_pad, ker_p, c2, w_p)

    return out[0, :B].reshape(B, 1)


def rbf_interp_ref(x, kernels, weights, linear_params):
    """Pure-JAX reference following the torch code literally (diff/norm form)."""
    x = (x - CENTER) / DELTA
    D = x.shape[1]
    diff = x[:, None, :] - kernels[None, :, :]          # (B, K, D)
    r = jnp.linalg.norm(diff, axis=-1)                  # (B, K)
    rbfs = jnp.exp(-(r * r))
    out = weights * rbfs                                # (B, K)
    lin = linear_params[:D][None, :] * x                # (B, D)
    return jnp.sum(out, axis=-1, keepdims=True) + jnp.sum(lin) + linear_params[D]


if __name__ == "__main__":
    key = jax.random.PRNGKey(0)
    k_x, k_ker, k_w = jax.random.split(key, 3)

    B = 8
    D = 16                       # inputSize
    K = 2 * D + 1                # default num_kernels = 33

    x = jax.random.normal(k_x, (B, D), jnp.float32)
    # kernels ~ U(-1, 1) as in nn.init.uniform_(self.kernels, a=-1.0, b=1.0)
    kernels = jax.random.uniform(k_ker, (K, D), jnp.float32, minval=-1.0, maxval=1.0)
    # self.weights is only produced by interpolate(); init deterministically here.
    weights = 0.1 * jax.random.normal(k_w, (1, K), jnp.float32)
    # __init__ zeros linear_params; use small deterministic values so the linear
    # path is actually exercised.
    linear_params = jnp.linspace(-0.5, 0.5, D + 1, dtype=jnp.float32)

    out = rbf_interp(x, kernels, weights, linear_params)
    jax.block_until_ready(out)

    ref = rbf_interp_ref(x, kernels, weights, linear_params)
    assert out.shape == (B, 1)
    assert jnp.allclose(out, ref, atol=1e-4, rtol=1e-4), (out, ref)

    print("KERNEL_OK")
</pallas_src>

<mosaic_0001>
module attributes {stable_mosaic.version = 11 : i64} {
  func.func @rbf_interp_kernel(%arg0: i32, %arg1: memref<1x1xf32, #tpu.memory_space<smem>>, %arg2: memref<128x16xf32, #tpu.memory_space<vmem>>, %arg3: memref<40x16xf32, #tpu.memory_space<vmem>>, %arg4: memref<40x1xf32, #tpu.memory_space<vmem>>, %arg5: memref<1x40xf32, #tpu.memory_space<vmem>>, %arg6: memref<1x128xf32, #tpu.memory_space<vmem>>) attributes {dimension_semantics = [#tpu.dimension_semantics<parallel>], iteration_bounds = array<i64: 1>, scalar_prefetch = 0 : i64, scratch_operands = 0 : i64, tpu.core_type = #tpu.core_type<tc>, window_params = [{transform_indices = @transform_0, window_bounds = array<i64: 1, 1>}, {transform_indices = @transform_1, window_bounds = array<i64: 128, 16>}, {pipeline_mode = #tpu.pipeline_mode<synchronous>, transform_indices = @transform_2, window_bounds = array<i64: 40, 16>}, {pipeline_mode = #tpu.pipeline_mode<synchronous>, transform_indices = @transform_3, window_bounds = array<i64: 40, 1>}, {pipeline_mode = #tpu.pipeline_mode<synchronous>, transform_indices = @transform_4, window_bounds = array<i64: 1, 40>}, {transform_indices = @transform_5, window_bounds = array<i64: 1, 128>}]} {
    %c0 = arith.constant 0 : index
    %c0_0 = arith.constant 0 : index
    %0 = vector.load %arg2[%c0, %c0_0] : memref<128x16xf32, #tpu.memory_space<vmem>>, vector<128x16xf32>
    %cst = arith.constant 0.000000e+00 : f32
    %1 = vector.broadcast %cst : f32 to vector<128x16xf32>
    %2 = arith.subf %0, %1 : vector<128x16xf32>
    %cst_1 = arith.constant 1.000000e+00 : f32
    %3 = vector.broadcast %cst_1 : f32 to vector<128x16xf32>
    %4 = arith.mulf %2, %3 : vector<128x16xf32>
    %c0_2 = arith.constant 0 : index
    %c0_3 = arith.constant 0 : index
    %5 = vector.load %arg3[%c0_2, %c0_3] : memref<40x16xf32, #tpu.memory_space<vmem>>, vector<40x16xf32>
    %cst_4 = arith.constant dense<0.000000e+00> : vector<40x128xf32>
    %6 = tpu.matmul %5, %4, %cst_4 {dimension_numbers = #tpu.dot_dimension_numbers<[1], [1], [0], [0], [0, 0, 1, 0], [], []>} : vector<40x16xf32>, vector<128x16xf32>, vector<40x128xf32> -> vector<40x128xf32>
    %cst_5 = arith.constant 1.000000e+00 : f32
    %7 = vector.broadcast %cst_5 : f32 to vector<1x16xf32>
    %8 = arith.mulf %4, %4 : vector<128x16xf32>
    %cst_6 = arith.constant dense<0.000000e+00> : vector<1x128xf32>
    %9 = tpu.matmul %7, %8, %cst_6 {dimension_numbers = #tpu.dot_dimension_numbers<[1], [1], [0], [0], [0, 0, 1, 0], [], []>} : vector<1x16xf32>, vector<128x16xf32>, vector<1x128xf32> -> vector<1x128xf32>
    %c0_7 = arith.constant 0 : index
    %c0_8 = arith.constant 0 : index
    %10 = vector.load %arg4[%c0_7, %c0_8] : memref<40x1xf32, #tpu.memory_space<vmem>>, vector<40x1xf32>
    %11 = vector.broadcast %10 : vector<40x1xf32> to vector<40x128xf32>
    %12 = vector.broadcast %9 : vector<1x128xf32> to vector<40x128xf32>
    %13 = arith.addf %11, %12 : vector<40x128xf32>
    %cst_9 = arith.constant 2.000000e+00 : f32
    %14 = vector.broadcast %cst_9 : f32 to vector<40x128xf32>
    %15 = arith.mulf %14, %6 : vector<40x128xf32>
    %16 = arith.subf %13, %15 : vector<40x128xf32>
    %cst_10 = arith.constant 0.000000e+00 : f32
    %17 = vector.broadcast %cst_10 : f32 to vector<40x128xf32>
    %18 = arith.maximumf %16, %17 : vector<40x128xf32>
    %cst_11 = arith.constant 0.000000e+00 : f32
    %19 = vector.broadcast %cst_11 : f32 to vector<40x128xf32>
    %20 = arith.subf %19, %18 : vector<40x128xf32>
    %21 = math.exp %20 : vector<40x128xf32>
    %c0_12 = arith.constant 0 : index
    %c0_13 = arith.constant 0 : index
    %22 = vector.load %arg5[%c0_12, %c0_13] : memref<1x40xf32, #tpu.memory_space<vmem>>, vector<1x40xf32>
    %cst_14 = arith.constant dense<0.000000e+00> : vector<1x128xf32>
    %23 = tpu.matmul %22, %21, %cst_14 {dimension_numbers = #tpu.dot_dimension_numbers<[1], [0], [0], [1], [0, 0, 1, 1], [], []>} : vector<1x40xf32>, vector<40x128xf32>, vector<1x128xf32> -> vector<1x128xf32>
    %c0_15 = arith.constant 0 : index
    %c0_16 = arith.constant 0 : index
    %24 = memref.load %arg1[%c0_15, %c0_16] : memref<1x1xf32, #tpu.memory_space<smem>>
    %25 = vector.broadcast %24 : f32 to vector<1x128xf32>
    %26 = arith.addf %23, %25 : vector<1x128xf32>
    %c0_17 = arith.constant 0 : index
    %c0_18 = arith.constant 0 : index
    %27 = vector.load %arg6[%c0_17, %c0_18] : memref<1x128xf32, #tpu.memory_space<vmem>>, vector<1x128xf32>
    tpu.vector_store %arg6[%c0_17, %c0_18], %26 {strides = array<i32>} : memref<1x128xf32, #tpu.memory_space<vmem>>, vector<1x128xf32>,
    return
  }
  func.func @transform_0(%arg0: i32) -> (i32, i32) {
    %c0_i32 = arith.constant 0 : i32
    %c0_i32_0 = arith.constant 0 : i32
    %c0_i32_1 = arith.constant 0 : i32
    return %c0_i32, %c0_i32_0 : i32, i32
  }
  func.func @transform_1(%arg0: i32) -> (i32, i32) {
    %c0_i32 = arith.constant 0 : i32
    %c0_i32_0 = arith.constant 0 : i32
    return %arg0, %c0_i32 : i32, i32
  }
  func.func @transform_2(%arg0: i32) -> (i32, i32) {
    %c0_i32 = arith.constant 0 : i32
    %c0_i32_0 = arith.constant 0 : i32
    %c0_i32_1 = arith.constant 0 : i32
    return %c0_i32, %c0_i32_0 : i32, i32
  }
  func.func @transform_3(%arg0: i32) -> (i32, i32) {
    %c0_i32 = arith.constant 0 : i32
    %c0_i32_0 = arith.constant 0 : i32
    %c0_i32_1 = arith.constant 0 : i32
    return %c0_i32, %c0_i32_0 : i32, i32
  }
  func.func @transform_4(%arg0: i32) -> (i32, i32) {
    %c0_i32 = arith.constant 0 : i32
    %c0_i32_0 = arith.constant 0 : i32
    %c0_i32_1 = arith.constant 0 : i32
    return %c0_i32, %c0_i32_0 : i32, i32
  }
  func.func @transform_5(%arg0: i32) -> (i32, i32) {
    %c0_i32 = arith.constant 0 : i32
    %c0_i32_0 = arith.constant 0 : i32
    return %c0_i32, %arg0 : i32, i32
  }
}

</mosaic_0001>

<llo_original>
// kernel: tpu_custom_call.1
$region0: #{tpu_custom_call.1}
  #allocation0 [shape = 'u32[]', space=smem, size = 0x4, offset = 0x4, fixed_abs, tag = 'smem constant byte address 0x4 - core index']
  #allocation1 [shape = 'u32[144,128]{1,0:T(1,128)}', space=vmem, size = 0x12000, scoped, tag = 'internal scratch']
  #allocation2 [shape = 'f32[1,1]{1,0:T(1,128)S(6)}', space=smem, size = 0x200, scoped, tag = 'scoped memory for tpu_custom_call.1']
  %s0 = inlined_call_operand.<no memory space> [shape: f32[1,1], index: 0, kind: input, shape index: {}]
  %s1 = inlined_call_operand.vmem [shape: f32[128,16], index: 1, kind: input, shape index: {}]
  %s2 = inlined_call_operand.vmem [shape: f32[40,16], index: 2, kind: input, shape index: {}]
  %s3 = inlined_call_operand.vmem [shape: f32[40,1], index: 3, kind: input, shape index: {}]
  %s4 = inlined_call_operand.vmem [shape: f32[1,40], index: 4, kind: input, shape index: {}]
  %s5 = inlined_call_operand.hbm [shape: f32[1,128], index: 5, kind: output, shape index: {}]
  %s6 = sld [smem:[#allocation0]]
  $region30: #{tpu_custom_call.1} parent=0
    _
  %s8 = ssub.s32 1, %s6
  %s9 = scalar_select 0, %s8, %s6
  %10 = sst [smem:[#allocation2]] %s0
  $region1: #{tpu_custom_call.1} parent=0
    #allocation3 [shape = 'u8[512]{0}', space=vmem, size = 0x400, scoped, tag = 'output window, operand 0, single buffered']
    #allocation4 [shape = 's32[1]{0}', space=sflag, size = 0x4, scoped, tag = 'scoped memory for tpu_custom_call.1']
    %11 = vsyncpa [#allocation4], 0
    // Predicated region
    $region2: #{tpu_custom_call.1} parent=1 // pred_check
      _
    $region3: #{tpu_custom_call.1} parent=1 // pred_check_branch
      %13 = sbr.rel (0) target = $region5
    $region4: #{tpu_custom_call.1} parent=1 // pred_region
      _
    $region5: #{tpu_custom_call.1} parent=1 // pred_fallthru
      _
    // Predicated region
    $region6: #{tpu_custom_call.1} parent=1 // pred_check
      _
    $region7: #{tpu_custom_call.1} parent=1 // pred_check_branch
      %15 = sbr.rel (0) target = $region9
    $region8: #{tpu_custom_call.1} parent=1 // pred_region
      _
    $region9: #{tpu_custom_call.1} parent=1 // pred_fallthru
      _
    // Predicated region
    $region10: #{tpu_custom_call.1} parent=1 // pred_check
      _
    $region11: #{tpu_custom_call.1} parent=1 // pred_check_branch
      %17 = sbr.rel (0) target = $region13
    $region12: #{tpu_custom_call.1} parent=1 // pred_region
      _
    $region13: #{tpu_custom_call.1} parent=1 // pred_fallthru
      _
    // Predicated region
    $region14: #{tpu_custom_call.1} parent=1 // pred_check
      _
    $region15: #{tpu_custom_call.1} parent=1 // pred_check_branch
      %19 = sbr.rel (0) target = $region17
    $region16: #{tpu_custom_call.1} parent=1 // pred_region
      _
    $region17: #{tpu_custom_call.1} parent=1 // pred_fallthru
      _
    // Predicated region
    $region18: #{tpu_custom_call.1} parent=1 // pred_check
      _
    $region19: #{tpu_custom_call.1} parent=1 // pred_check_branch
      %21 = sbr.rel (0) target = $region21
    $region20: #{tpu_custom_call.1} parent=1 // pred_region
      _
    $region21: #{tpu_custom_call.1} parent=1 // pred_fallthru
      _
    %v22 = vld [vmem:[%s1] sm:$0xff]
    %v23 = vld [vmem:[%s1 + $0x8] sm:$0xff]
    %v24 = vld [vmem:[%s1 + $0x10] sm:$0xff]
    %v25 = vld [vmem:[%s1 + $0x18] sm:$0xff]
    %v26 = vld [vmem:[%s1 + $0x20] sm:$0xff]
    %v27 = vld [vmem:[%s1 + $0x28] sm:$0xff]
    %v28 = vld [vmem:[%s1 + $0x30] sm:$0xff]
    %v29 = vld [vmem:[%s1 + $0x38] sm:$0xff]
    %v30 = vld [vmem:[%s1 + $0x40] sm:$0xff]
    %v31 = vld [vmem:[%s1 + $0x48] sm:$0xff]
    %v32 = vld [vmem:[%s1 + $0x50] sm:$0xff]
    %v33 = vld [vmem:[%s1 + $0x58] sm:$0xff]
    %v34 = vld [vmem:[%s1 + $0x60] sm:$0xff]
    %v35 = vld [vmem:[%s1 + $0x68] sm:$0xff]
    %v36 = vld [vmem:[%s1 + $0x70] sm:$0xff]
    %v37 = vld [vmem:[%s1 + $0x78] sm:$0xff]
    %v38 = vld [vmem:[%s2] sm:$0xff]
    %v39 = vld [vmem:[%s2 + $0x8] sm:$0xff]
    %v40 = vld [vmem:[%s2 + $0x10] sm:$0xff]
    %v41 = vld [vmem:[%s2 + $0x18] sm:$0xff]
    %v42 = vld [vmem:[%s2 + $0x20] sm:$0xff]
    %vm43 = vcmask 130048
    %v45 = vsel %vm43, %v38, 0
    %v48 = vsel %vm43, %v39, 0
    %v51 = vsel %vm43, %v40, 0
    %v54 = vsel %vm43, %v41, 0
    %v57 = vsel %vm43, %v42, 0
    %v60 = vsel %vm43, %v22, 0
    %v63 = vsel %vm43, %v23, 0
    %v66 = vsel %vm43, %v24, 0
    %v69 = vsel %vm43, %v25, 0
    %v72 = vsel %vm43, %v26, 0
    %v75 = vsel %vm43, %v27, 0
    %v78 = vsel %vm43, %v28, 0
    %v81 = vsel %vm43, %v29, 0
    %v84 = vsel %vm43, %v30, 0
    %v87 = vsel %vm43, %v31, 0
    %v90 = vsel %vm43, %v32, 0
    %v93 = vsel %vm43, %v33, 0
    %v96 = vsel %vm43, %v34, 0
    %v99 = vsel %vm43, %v35, 0
    %v102 = vsel %vm43, %v36, 0
    %v105 = vsel %vm43, %v37, 0
    %107 = vmatprep.subr.mxu0 0.0
    %108 = vmatpush1.xpose.msra.mxu0 %v60
    %109 = vmatprep.subr.mxu0 0.0
    %110 = vmatpush1.xpose.msra.mxu0 %v63
    %111 = vmatprep.subr.mxu0 0.0
    %112 = vmatpush1.xpose.msra.mxu0 %v66
    %113 = vmatprep.subr.mxu0 0.0
    %114 = vmatpush1.xpose.msra.mxu0 %v69
    %115 = vmatprep.subr.mxu0 0.0
    %116 = vmatpush1.xpose.msra.mxu0 %v72
    %117 = vmatprep.subr.mxu0 0.0
    %118 = vmatpush1.xpose.msra.mxu0 %v75
    %119 = vmatprep.subr.mxu0 0.0
    %120 = vmatpush1.xpose.msra.mxu0 %v78
    %121 = vmatprep.subr.mxu0 0.0
    %122 = vmatpush1.xpose.msra.mxu0 %v81
    %123 = vmatprep.subr.mxu0 0.0
    %124 = vmatpush1.xpose.msra.mxu0 %v84
    %125 = vmatprep.subr.mxu0 0.0
    %126 = vmatpush1.xpose.msra.mxu0 %v87
    %127 = vmatprep.subr.mxu0 0.0
    %128 = vmatpush1.xpose.msra.mxu0 %v90
    %129 = vmatprep.subr.mxu0 0.0
    %130 = vmatpush1.xpose.msra.mxu0 %v93
    %131 = vmatprep.subr.mxu0 0.0
    %132 = vmatpush1.xpose.msra.mxu0 %v96
    %133 = vmatprep.subr.mxu0 0.0
    %134 = vmatpush1.xpose.msra.mxu0 %v99
    %135 = vmatprep.subr.mxu0 0.0
    %136 = vmatpush1.xpose.msra.mxu0 %v102
    %137 = vmatprep.subr.mxu0 0.0
    %138 = vmatpush1.xpose.msra.mxu0 %v105
    %139 = vmatprep.subr.mxu0 0.0
    %140 = vmatpush1.xpose.msra.mxu0 0.0
    %141 = vmatprep.subr.mxu0 0.0
    %142 = vmatpush1.xpose.msra.mxu0 0.0
    %143 = vmatprep.subr.mxu0 0.0
    %144 = vmatpush1.xpose.msra.mxu0 0.0
    %145 = vmatprep.subr.mxu0 0.0
    %146 = vmatpush1.xpose.msra.mxu0 0.0
    %147 = vmatprep.subr.mxu0 0.0
    %148 = vmatpush1.xpose.msra.mxu0 0.0
    %149 = vmatprep.subr.mxu0 0.0
    %150 = vmatpush1.xpose.msra.mxu0 0.0
    %151 = vmatprep.subr.mxu0 0.0
    %152 = vmatpush1.xpose.msra.mxu0 0.0
    %153 = vmatprep.subr.mxu0 0.0
    %154 = vmatpush1.xpose.msra.mxu0 0.0
    %155 = vmatprep.subr.mxu0 0.0
    %156 = vmatpush1.xpose.msra.mxu0 0.0
    %157 = vmatprep.subr.mxu0 0.0
    %158 = vmatpush1.xpose.msra.mxu0 0.0
    %159 = vmatprep.subr.mxu0 0.0
    %160 = vmatpush1.xpose.msra.mxu0 0.0
    %161 = vmatprep.subr.mxu0 0.0
    %162 = vmatpush1.xpose.msra.mxu0 0.0
    %163 = vmatprep.subr.mxu0 0.0
    %164 = vmatpush1.xpose.msra.mxu0 0.0
    %165 = vmatprep.subr.mxu0 0.0
    %166 = vmatpush1.xpose.msra.mxu0 0.0
    %167 = vmatprep.subr.mxu0 0.0
    %168 = vmatpush1.xpose.msra.mxu0 0.0
    %169 = vmatprep.subr.mxu0 0.0
    %170 = vmatpush1.xpose.msra.mxu0 0.0
    %171 = vmatprep.mubr.f32.mxu0 0.0
    %172 = vmatmul.mubr.f32.gmra.mrb[0].mxu0 %v45
    %v173 = vpop.f32.mrb[0].mxu0
    %v174 = vadd.f32 0.0, %v173
    %v175 = vpop.f32.mrb[0].mxu0
    %176 = vmatprep.mubr.f32.mxu0 0.0
    %177 = vmatmul.mubr.f32.gmra.mrb[0].mxu0 %v48
    %v178 = vpop.f32.mrb[0].mxu0
    %v179 = vadd.f32 0.0, %v178
    %v180 = vpop.f32.mrb[0].mxu0
    %181 = vmatprep.mubr.f32.mxu0 0.0
    %182 = vmatmul.mubr.f32.gmra.mrb[0].mxu0 %v51
    %v183 = vpop.f32.mrb[0].mxu0
    %v184 = vadd.f32 0.0, %v183
    %v185 = vpop.f32.mrb[0].mxu0
    %186 = vmatprep.mubr.f32.mxu0 0.0
    %187 = vmatmul.mubr.f32.gmra.mrb[0].mxu0 %v54
    %v188 = vpop.f32.mrb[0].mxu0
    %v189 = vadd.f32 0.0, %v188
    %v190 = vpop.f32.mrb[0].mxu0
    %191 = vmatprep.mubr.f32.mxu0 0.0
    %192 = vmatmul.mubr.f32.gmra.mrb[0].mxu0 %v57
    %v193 = vpop.f32.mrb[0].mxu0
    %v194 = vadd.f32 0.0, %v193
    %v195 = vpop.f32.mrb[0].mxu0
    %196 = vdwg.mxu0
    %v197 = vmul.f32 %v22, %v22
    %v198 = vmul.f32 %v23, %v23
    %v199 = vmul.f32 %v24, %v24
    %v200 = vmul.f32 %v25, %v25
    %v201 = vmul.f32 %v26, %v26
    %v202 = vmul.f32 %v27, %v27
    %v203 = vmul.f32 %v28, %v28
    %v204 = vmul.f32 %v29, %v29
    %v205 = vmul.f32 %v30, %v30
    %v206 = vmul.f32 %v31, %v31
    %v207 = vmul.f32 %v32, %v32
    %v208 = vmul.f32 %v33, %v33
    %v209 = vmul.f32 %v34, %v34
    %v210 = vmul.f32 %v35, %v35
    %v211 = vmul.f32 %v36, %v36
    %v212 = vmul.f32 %v37, %v37
    %v214 = vsel %vm43, 1.0, 0
    %v217 = vsel %vm43, %v197, 0
    %v220 = vsel %vm43, %v198, 0
    %v223 = vsel %vm43, %v199, 0
    %v226 = vsel %vm43, %v200, 0
    %v229 = vsel %vm43, %v201, 0
    %v232 = vsel %vm43, %v202, 0
    %v235 = vsel %vm43, %v203, 0
    %v238 = vsel %vm43, %v204, 0
    %v241 = vsel %vm43, %v205, 0
    %v244 = vsel %vm43, %v206, 0
    %v247 = vsel %vm43, %v207, 0
    %v250 = vsel %vm43, %v208, 0
    %v253 = vsel %vm43, %v209, 0
    %v256 = vsel %vm43, %v210, 0
    %v259 = vsel %vm43, %v211, 0
    %v262 = vsel %vm43, %v212, 0
    %264 = vmatprep.subr.mxu0 0.0
    %265 = vmatpush1.xpose.msra.mxu0 %v217
    %266 = vmatprep.subr.mxu0 0.0
    %267 = vmatpush1.xpose.msra.mxu0 %v220
    %268 = vmatprep.subr.mxu0 0.0
    %269 = vmatpush1.xpose.msra.mxu0 %v223
    %270 = vmatprep.subr.mxu0 0.0
    %271 = vmatpush1.xpose.msra.mxu0 %v226
    %272 = vmatprep.subr.mxu0 0.0
    %273 = vmatpush1.xpose.msra.mxu0 %v229
    %274 = vmatprep.subr.mxu0 0.0
    %275 = vmatpush1.xpose.msra.mxu0 %v232
    %276 = vmatprep.subr.mxu0 0.0
    %277 = vmatpush1.xpose.msra.mxu0 %v235
    %278 = vmatprep.subr.mxu0 0.0
    %279 = vmatpush1.xpose.msra.mxu0 %v238
    %280 = vmatprep.subr.mxu0 0.0
    %281 = vmatpush1.xpose.msra.mxu0 %v241
    %282 = vmatprep.subr.mxu0 0.0
    %283 = vmatpush1.xpose.msra.mxu0 %v244
    %284 = vmatprep.subr.mxu0 0.0
    %285 = vmatpush1.xpose.msra.mxu0 %v247
    %286 = vmatprep.subr.mxu0 0.0
    %287 = vmatpush1.xpose.msra.mxu0 %v250
    %288 = vmatprep.subr.mxu0 0.0
    %289 = vmatpush1.xpose.msra.mxu0 %v253
    %290 = vmatprep.subr.mxu0 0.0
    %291 = vmatpush1.xpose.msra.mxu0 %v256
    %292 = vmatprep.subr.mxu0 0.0
    %293 = vmatpush1.xpose.msra.mxu0 %v259
    %294 = vmatprep.subr.mxu0 0.0
    %295 = vmatpush1.xpose.msra.mxu0 %v262
    %296 = vmatprep.subr.mxu0 0.0
    %297 = vmatpush1.xpose.msra.mxu0 0.0
    %298 = vmatprep.subr.mxu0 0.0
    %299 = vmatpush1.xpose.msra.mxu0 0.0
    %300 = vmatprep.subr.mxu0 0.0
    %301 = vmatpush1.xpose.msra.mxu0 0.0
    %302 = vmatprep.subr.mxu0 0.0
    %303 = vmatpush1.xpose.msra.mxu0 0.0
    %304 = vmatprep.subr.mxu0 0.0
    %305 = vmatpush1.xpose.msra.mxu0 0.0
    %306 = vmatprep.subr.mxu0 0.0
    %307 = vmatpush1.xpose.msra.mxu0 0.0
    %308 = vmatprep.subr.mxu0 0.0
    %309 = vmatpush1.xpose.msra.mxu0 0.0
    %310 = vmatprep.subr.mxu0 0.0
    %311 = vmatpush1.xpose.msra.mxu0 0.0
    %312 = vmatprep.subr.mxu0 0.0
    %313 = vmatpush1.xpose.msra.mxu0 0.0
    %314 = vmatprep.subr.mxu0 0.0
    %315 = vmatpush1.xpose.msra.mxu0 0.0
    %316 = vmatprep.subr.mxu0 0.0
    %317 = vmatpush1.xpose.msra.mxu0 0.0
    %318 = vmatprep.subr.mxu0 0.0
    %319 = vmatpush1.xpose.msra.mxu0 0.0
    %320 = vmatprep.subr.mxu0 0.0
    %321 = vmatpush1.xpose.msra.mxu0 0.0
    %322 = vmatprep.subr.mxu0 0.0
    %323 = vmatpush1.xpose.msra.mxu0 0.0
    %324 = vmatprep.subr.mxu0 0.0
    %325 = vmatpush1.xpose.msra.mxu0 0.0
    %326 = vmatprep.subr.mxu0 0.0
    %327 = vmatpush1.xpose.msra.mxu0 0.0
    %328 = vmatprep.mubr.f32.mxu0 0.0
    %329 = vmatmul.mubr.f32.gmra.mrb[0].mxu0 %v214
    %v330 = vpop.f32.mrb[0].mxu0
    %v331 = vadd.f32 0.0, %v330
    %v332 = vpop.f32.mrb[0].mxu0
    %333 = vdwg.mxu0
    %v334 = vld [vmem:[%s3] sm:$0xff]
    %v335 = vld [vmem:[%s3 + $0x8] sm:$0xff]
    %v336 = vld [vmem:[%s3 + $0x10] sm:$0xff]
    %v337 = vld [vmem:[%s3 + $0x18] sm:$0xff]
    %v338 = vld [vmem:[%s3 + $0x20] sm:$0xff]
    %340 = vset.pattern.permute.xlu0 0
    %341 = vperm.xlu0 %340, %v334
    %v342 = vpop.permute.xlu0 %341
    %345 = vset.pattern.permute.xlu0 0
    %346 = vperm.xlu0 %345, %v335
    %v347 = vpop.permute.xlu0 %346
    %350 = vset.pattern.permute.xlu0 0
    %351 = vperm.xlu0 %350, %v336
    %v352 = vpop.permute.xlu0 %351
    %355 = vset.pattern.permute.xlu0 0
    %356 = vperm.xlu0 %355, %v337
    %v357 = vpop.permute.xlu0 %356
    %360 = vset.pattern.permute.xlu0 0
    %361 = vperm.xlu0 %360, %v338
    %v362 = vpop.permute.xlu0 %361
    %v364 = vlaneseq
    %v365 = vshrl.u32 %v364, 7
    %v366 = vsub.s32 0, %v365
    %v367 = vrot.slane %v331, %v366
    %v368 = vadd.f32 %v342, %v367
    %v369 = vadd.f32 %v347, %v367
    %v370 = vadd.f32 %v352, %v367
    %v371 = vadd.f32 %v357, %v367
    %v372 = vadd.f32 %v362, %v367
    %v373 = vmul.f32 %v174, 2.0
    %v374 = vmul.f32 %v179, 2.0
    %v375 = vmul.f32 %v184, 2.0
    %v376 = vmul.f32 %v189, 2.0
    %v377 = vmul.f32 %v194, 2.0
    %v378 = vsub.f32 %v368, %v373
    %v379 = vsub.f32 %v369, %v374
    %v380 = vsub.f32 %v370, %v375
    %v381 = vsub.f32 %v371, %v376
    %v382 = vsub.f32 %v372, %v377
    %v383 = vmax.f32 %v378, 0.0
    %v384 = vmax.f32 %v379, 0.0
    %v385 = vmax.f32 %v380, 0.0
    %v386 = vmax.f32 %v381, 0.0
    %v387 = vmax.f32 %v382, 0.0
    %v388 = vsub.f32 0.0, %v383
    %v389 = vsub.f32 0.0, %v384
    %v390 = vsub.f32 0.0, %v385
    %v391 = vsub.f32 0.0, %v386
    %v392 = vsub.f32 0.0, %v387
    %v393 = vmul.f32 %v388, 1.442695
    %v394 = vpow.pop %v393
    %v395 = vmul.f32 %v389, 1.442695
    %v396 = vpow.pop %v395
    %v397 = vmul.f32 %v390, 1.442695
    %v398 = vpow.pop %v397
    %v399 = vmul.f32 %v391, 1.442695
    %v400 = vpow.pop %v399
    %v401 = vmul.f32 %v392, 1.442695
    %v402 = vpow.pop %v401
    %v403 = vld [vmem:[%s4] sm:$0x1]
    %s404 = sld [smem:[#allocation2]]
    %v405 = vstv %s404
    %vm406 = vcmask 326656
    %v408 = vsel %vm406, %v403, 0
    %410 = vmatprep.subr.mxu0 0.0
    %411 = vmatpush1.msra.mxu0 %v394
    %412 = vmatprep.subr.mxu0 0.0
    %413 = vmatpush1.msra.mxu0 %v396
    %414 = vmatprep.subr.mxu0 0.0
    %415 = vmatpush1.msra.mxu0 %v398
    %416 = vmatprep.subr.mxu0 0.0
    %417 = vmatpush1.msra.mxu0 %v400
    %418 = vmatprep.subr.mxu0 0.0
    %419 = vmatpush1.msra.mxu0 %v402
    %420 = vmatprep.subr.mxu0 0.0
    %421 = vmatpush1.msra.mxu0 0.0
    %422 = vmatprep.subr.mxu0 0.0
    %423 = vmatpush1.msra.mxu0 0.0
    %424 = vmatprep.subr.mxu0 0.0
    %425 = vmatpush1.msra.mxu0 0.0
    %426 = vmatprep.subr.mxu0 0.0
    %427 = vmatpush1.msra.mxu0 0.0
    %428 = vmatprep.subr.mxu0 0.0
    %429 = vmatpush1.msra.mxu0 0.0
    %430 = vmatprep.subr.mxu0 0.0
    %431 = vmatpush1.msra.mxu0 0.0
    %432 = vmatprep.subr.mxu0 0.0
    %433 = vmatpush1.msra.mxu0 0.0
    %434 = vmatprep.subr.mxu0 0.0
    %435 = vmatpush1.msra.mxu0 0.0
    %436 = vmatprep.subr.mxu0 0.0
    %437 = vmatpush1.msra.mxu0 0.0
    %438 = vmatprep.subr.mxu0 0.0
    %439 = vmatpush1.msra.mxu0 0.0
    %440 = vmatprep.subr.mxu0 0.0
    %441 = vmatpush1.msra.mxu0 0.0
    %442 = vmatprep.subr.mxu0 0.0
    %443 = vmatpush1.msra.mxu0 0.0
    %444 = vmatprep.subr.mxu0 0.0
    %445 = vmatpush1.msra.mxu0 0.0
    %446 = vmatprep.subr.mxu0 0.0
    %447 = vmatpush1.msra.mxu0 0.0
    %448 = vmatprep.subr.mxu0 0.0
    %449 = vmatpush1.msra.mxu0 0.0
    %450 = vmatprep.subr.mxu0 0.0
    %451 = vmatpush1.msra.mxu0 0.0
    %452 = vmatprep.subr.mxu0 0.0
    %453 = vmatpush1.msra.mxu0 0.0
    %454 = vmatprep.subr.mxu0 0.0
    %455 = vmatpush1.msra.mxu0 0.0
    %456 = vmatprep.subr.mxu0 0.0
    %457 = vmatpush1.msra.mxu0 0.0
    %458 = vmatprep.subr.mxu0 0.0
    %459 = vmatpush1.msra.mxu0 0.0
    %460 = vmatprep.subr.mxu0 0.0
    %461 = vmatpush1.msra.mxu0 0.0
    %462 = vmatprep.subr.mxu0 0.0
    %463 = vmatpush1.msra.mxu0 0.0
    %464 = vmatprep.subr.mxu0 0.0
    %465 = vmatpush1.msra.mxu0 0.0
    %466 = vmatprep.subr.mxu0 0.0
    %467 = vmatpush1.msra.mxu0 0.0
    %468 = vmatprep.subr.mxu0 0.0
    %469 = vmatpush1.msra.mxu0 0.0
    %470 = vmatprep.subr.mxu0 0.0
    %471 = vmatpush1.msra.mxu0 0.0
    %472 = vmatprep.subr.mxu0 0.0
    %473 = vmatpush1.msra.mxu0 0.0
    %474 = vmatprep.mubr.f32.mxu0 0.0
    %475 = vmatmul.mubr.f32.gmra.mrb[0].mxu0 %v408
    %v476 = vpop.f32.mrb[0].mxu0
    %v477 = vadd.f32 %v405, %v476
    %v478 = vpop.f32.mrb[0].mxu0
    %479 = vdwg.mxu0
    %480 = vst [vmem:[#allocation3] sm:$0x1] %v477
    // Predicated region
    $region22: #{tpu_custom_call.1} parent=1 // pred_check
      _
    $region23: #{tpu_custom_call.1} parent=1 // pred_check_branch
      %482 = sbr.rel (0) target = $region25
    $region24: #{tpu_custom_call.1} parent=1 // pred_region
      %s484 = ssub.s32 16, 16
      %485 = vsyncadd [#allocation4], %s484
      %s487 = sshll.u32 [#allocation3], 4
      %s488 = int_to_ptr.vmem [resolvable:$true] %s487
      %490 = dma.vmem_to_hbm [thread:$0]  %s488, 16, %s5, [#allocation4]
    $region25: #{tpu_custom_call.1} parent=1 // pred_fallthru
      _
    // Predicated region
    $region26: #{tpu_custom_call.1} parent=1 // pred_check
      _
    $region27: #{tpu_custom_call.1} parent=1 // pred_check_branch
      %492 = sbr.rel (0) target = $region29
    $region28: #{tpu_custom_call.1} parent=1 // pred_region
      %493 = dma.done [#allocation4], 16
    $region29: #{tpu_custom_call.1} parent=1 // pred_fallthru
      _
    %494 = vsyncpa [#allocation4], 1

</llo_original>
